<compile_context>
chip_gen: v5e
topology: v5e:2x2
jax: 0.10.0
libtpu: 0.0.40
codegen_flags: <defaults>
</compile_context>

<pallas_src>
import functools

import jax
import jax.numpy as jnp
from jax.experimental import pallas as pl
from jax.experimental.pallas import tpu as pltpu


def _cdiv(a, b):
    return (a + b - 1) // b


def _round_up(x, m):
    return _cdiv(x, m) * m


def _fit_tile(dim, tile_max, align):
    """Largest aligned tile <= tile_max that minimizes zero-padding of `dim`."""
    if dim <= tile_max:
        return _round_up(dim, align)
    nblk = _cdiv(dim, tile_max)
    return _round_up(_cdiv(dim, nblk), align)


# ---------------------------------------------------------------------------
# Kernels
# ---------------------------------------------------------------------------
def _addmm_single_kernel(inp_ref, a_ref, b_ref, o_ref):
    # Single shot: whole problem resident in VMEM, one MXU pass, bias fused.
    o_ref[...] = (
        inp_ref[...].astype(jnp.float32)
        + jnp.dot(a_ref[...], b_ref[...], preferred_element_type=jnp.float32)
    ).astype(o_ref.dtype)


def _addmm_tiled_f32_kernel(inp_ref, a_ref, b_ref, o_ref):
    # f32 output: accumulate directly into the resident output tile (its
    # index_map is K-invariant).  Bias initializes the accumulator, so there
    # is no zero-fill and no final add.
    @pl.when(pl.program_id(2) == 0)
    def _():
        o_ref[...] = inp_ref[...].astype(jnp.float32)

    o_ref[...] += jnp.dot(
        a_ref[...], b_ref[...], preferred_element_type=jnp.float32
    )


def _addmm_tiled_scratch_kernel(inp_ref, a_ref, b_ref, o_ref, acc_ref):
    # Sub-f32 outputs: f32 VMEM accumulator, bias-initialized, cast once at the
    # final K step.
    k = pl.program_id(2)

    @pl.when(k == 0)
    def _():
        acc_ref[...] = inp_ref[...].astype(jnp.float32)

    acc_ref[...] += jnp.dot(
        a_ref[...], b_ref[...], preferred_element_type=jnp.float32
    )

    @pl.when(k == pl.num_programs(2) - 1)
    def _():
        o_ref[...] = acc_ref[...].astype(o_ref.dtype)


# ---------------------------------------------------------------------------
# Wrapper
# ---------------------------------------------------------------------------
@functools.partial(jax.jit, static_argnames=("tm", "tn", "tk"))
def addmm_cat(inp, mat1, mat2, *, tm=512, tn=1024, tk=512):
    """out = torch.cat([torch.addmm(inp, mat1, mat2)]) == inp + mat1 @ mat2."""
    M, K = mat1.shape
    K2, N = mat2.shape
    assert K == K2 and inp.shape == (M, N)

    out_dtype = jnp.result_type(inp.dtype, mat1.dtype, mat2.dtype)
    out_itemsize = jnp.dtype(out_dtype).itemsize

    # ---- Tiny-problem fast path: no padding, no grid, no pipeline ----------
    if M <= tm and N <= tn and K <= tk:
        return pl.pallas_call(
            _addmm_single_kernel,
            out_shape=jax.ShapeDtypeStruct((M, N), out_dtype),
            cost_estimate=pl.CostEstimate(
                flops=2 * M * N * K,
                transcendentals=0,
                bytes_accessed=(
                    mat1.dtype.itemsize * M * K
                    + mat2.dtype.itemsize * K * N
                    + inp.dtype.itemsize * M * N
                    + out_itemsize * M * N
                ),
            ),
        )(inp, mat1, mat2)

    # ---- Tiled, pipelined path ---------------------------------------------
    # Aligned tiles clamped to the problem with minimal padding waste.
    tm = _fit_tile(M, tm, 8)
    tn = _fit_tile(N, tn, 128)
    tk = _fit_tile(K, tk, 128)

    # v7x megacore: prefer >= 2 parallel (i, j) blocks when possible.
    if _cdiv(M, tm) * _cdiv(N, tn) < 2 and N >= 256:
        tn = _round_up(_cdiv(N, 2), 128)

    Mp, Np, Kp = _round_up(M, tm), _round_up(N, tn), _round_up(K, tk)

    # Zero padding is neutral for both the matmul and the add.
    inp_p = inp if (Mp, Np) == (M, N) else jnp.pad(inp, ((0, Mp - M), (0, Np - N)))
    a_p = mat1 if (Mp, Kp) == (M, K) else jnp.pad(mat1, ((0, Mp - M), (0, Kp - K)))
    b_p = mat2 if (Kp, Np) == (K, N) else jnp.pad(mat2, ((0, Kp - K), (0, Np - N)))

    gi, gj, gk = Mp // tm, Np // tn, Kp // tk

    acc_in_out = (out_dtype == jnp.float32) and (inp.dtype == jnp.float32)
    kernel = _addmm_tiled_f32_kernel if acc_in_out else _addmm_tiled_scratch_kernel
    scratch = [] if acc_in_out else [pltpu.VMEM((tm, tn), jnp.float32)]

    # VMEM budget from the actual (double-buffered) tile footprint so the same
    # tiling compiles on v5e/v6e (128 MiB VMEM) and v7x (64 MiB VMEM).
    footprint = (
        2 * tm * tk * mat1.dtype.itemsize
        + 2 * tk * tn * mat2.dtype.itemsize
        + 2 * tm * tn * inp.dtype.itemsize
        + 2 * tm * tn * out_itemsize
        + (0 if acc_in_out else tm * tn * 4)
    )
    vmem_limit = int(min(max(footprint + (8 << 20), 32 << 20), 64 << 20))

    # Alias the (padded) bias buffer as the output buffer when dtypes match.
    io_alias = {0: 0} if inp_p.dtype == out_dtype else {}

    out_p = pl.pallas_call(
        kernel,
        out_shape=jax.ShapeDtypeStruct((Mp, Np), out_dtype),
        grid_spec=pltpu.PrefetchScalarGridSpec(
            num_scalar_prefetch=0,
            grid=(gi, gj, gk),
            in_specs=[
                pl.BlockSpec((tm, tn), lambda i, j, k: (i, j)),  # bias tile
                pl.BlockSpec((tm, tk), lambda i, j, k: (i, k)),  # mat1 tile
                pl.BlockSpec((tk, tn), lambda i, j, k: (k, j)),  # mat2 tile
            ],
            out_specs=pl.BlockSpec((tm, tn), lambda i, j, k: (i, j)),
            scratch_shapes=scratch,
        ),
        compiler_params=pltpu.CompilerParams(
            dimension_semantics=("parallel", "parallel", "arbitrary"),
            vmem_limit_bytes=vmem_limit,
        ),
        input_output_aliases=io_alias,
        cost_estimate=pl.CostEstimate(
            flops=2 * Mp * Np * Kp,
            transcendentals=0,
            bytes_accessed=(
                mat1.dtype.itemsize * Mp * Kp * gj   # A streamed once per N block
                + mat2.dtype.itemsize * Kp * Np * gi  # B streamed once per M block
                + inp.dtype.itemsize * Mp * Np        # bias read once
                + out_itemsize * Mp * Np              # output written once
            ),
        ),
    )(inp_p, a_p, b_p)

    if (Mp, Np) != (M, N):
        out_p = out_p[:M, :N]
    return out_p


if __name__ == "__main__":
    key = jax.random.PRNGKey(0)
    k1, k2, k3 = jax.random.split(key, 3)

    # Small shapes consistent with the module's intent: (M,K)@(K,N) + (M,N).
    M, K, N = 64, 32, 64
    inp = jax.random.normal(k1, (M, N), dtype=jnp.float32)
    mat1 = jax.random.normal(k2, (M, K), dtype=jnp.float32)
    mat2 = jax.random.normal(k3, (K, N), dtype=jnp.float32)

    out = jax.block_until_ready(addmm_cat(inp, mat1, mat2))
    ref = inp + mat1 @ mat2
    assert out.shape == (M, N) and out.dtype == ref.dtype
    assert jnp.allclose(out, ref, atol=1e-4, rtol=1e-4)

    # Also exercise the tiled/pipelined path (forces a multi-step K grid).
    M2, K2, N2 = 384, 1024, 512
    k4, k5, k6 = jax.random.split(k3, 3)
    inp2 = jax.random.normal(k4, (M2, N2), dtype=jnp.float32)
    a2 = jax.random.normal(k5, (M2, K2), dtype=jnp.float32)
    b2 = jax.random.normal(k6, (K2, N2), dtype=jnp.float32)
    out2 = jax.block_until_ready(addmm_cat(inp2, a2, b2, tm=128, tn=256, tk=256))
    ref2 = inp2 + jnp.dot(a2, b2, precision=jax.lax.Precision.HIGHEST)
    assert jnp.allclose(out2, ref2, atol=1e-2, rtol=1e-2)

    print("KERNEL_OK")
</pallas_src>

<mosaic_0001>
module attributes {stable_mosaic.version = 11 : i64} {
  func.func @_addmm_single_kernel(%arg0: memref<64x64xf32, #tpu.memory_space<vmem>>, %arg1: memref<64x32xf32, #tpu.memory_space<vmem>>, %arg2: memref<32x64xf32, #tpu.memory_space<vmem>>, %arg3: memref<64x64xf32, #tpu.memory_space<vmem>>) attributes {dimension_semantics = [], scalar_prefetch = 0 : i64, scratch_operands = 0 : i64, tpu.core_type = #tpu.core_type<tc>} {
    %c0 = arith.constant 0 : index
    %c0_0 = arith.constant 0 : index
    %0 = vector.load %arg0[%c0, %c0_0] : memref<64x64xf32, #tpu.memory_space<vmem>>, vector<64x64xf32>
    %c0_1 = arith.constant 0 : index
    %c0_2 = arith.constant 0 : index
    %1 = vector.load %arg1[%c0_1, %c0_2] : memref<64x32xf32, #tpu.memory_space<vmem>>, vector<64x32xf32>
    %c0_3 = arith.constant 0 : index
    %c0_4 = arith.constant 0 : index
    %2 = vector.load %arg2[%c0_3, %c0_4] : memref<32x64xf32, #tpu.memory_space<vmem>>, vector<32x64xf32>
    %cst = arith.constant dense<0.000000e+00> : vector<64x64xf32>
    %3 = tpu.matmul %1, %2, %cst {dimension_numbers = #tpu.dot_dimension_numbers<[1], [0], [0], [1], [0, 0, 1, 1], [], []>} : vector<64x32xf32>, vector<32x64xf32>, vector<64x64xf32> -> vector<64x64xf32>
    %4 = arith.addf %0, %3 : vector<64x64xf32>
    %c0_5 = arith.constant 0 : index
    %c0_6 = arith.constant 0 : index
    %5 = vector.load %arg3[%c0_5, %c0_6] : memref<64x64xf32, #tpu.memory_space<vmem>>, vector<64x64xf32>
    tpu.vector_store %arg3[%c0_5, %c0_6], %4 {strides = array<i32>} : memref<64x64xf32, #tpu.memory_space<vmem>>, vector<64x64xf32>,
    return
  }
}

</mosaic_0001>

<llo_original>
// kernel: addmm_cat.1
$region0: #{addmm_cat.1}
  #allocation0 [shape = 'u32[]', space=smem, size = 0x4, offset = 0x4, fixed_abs, tag = 'smem constant byte address 0x4 - core index']
  #allocation1 [shape = 'u32[72,128]{1,0:T(1,128)}', space=vmem, size = 0x9000, scoped, tag = 'internal scratch']
  %s0 = inlined_call_operand.vmem [shape: f32[64,64], index: 0, kind: input, shape index: {}]
  %s1 = inlined_call_operand.vmem [shape: f32[64,32], index: 1, kind: input, shape index: {}]
  %s2 = inlined_call_operand.vmem [shape: f32[32,64], index: 2, kind: input, shape index: {}]
  %s3 = inlined_call_operand.hbm [shape: f32[64,64], index: 3, kind: output, shape index: {}]
  %s4 = sld [smem:[#allocation0]]
  $region22: #{addmm_cat.1} parent=0
    _
  %s6 = ssub.s32 1, %s4
  %s7 = scalar_select 0, %s6, %s4
  $region1: #{addmm_cat.1} parent=0
    #allocation2 [shape = 'u8[32768]{0}', space=vmem, size = 0x8000, scoped, tag = 'output window, operand 0, single buffered']
    #allocation3 [shape = 's32[1]{0}', space=sflag, size = 0x4, scoped, tag = 'scoped memory for addmm_cat.1']
    %8 = vsyncpa [#allocation3], 0
    // Predicated region
    $region2: #{addmm_cat.1} parent=1 // pred_check
      _
    $region3: #{addmm_cat.1} parent=1 // pred_check_branch
      %10 = sbr.rel (0) target = $region5
    $region4: #{addmm_cat.1} parent=1 // pred_region
      _
    $region5: #{addmm_cat.1} parent=1 // pred_fallthru
      _
    // Predicated region
    $region6: #{addmm_cat.1} parent=1 // pred_check
      _
    $region7: #{addmm_cat.1} parent=1 // pred_check_branch
      %12 = sbr.rel (0) target = $region9
    $region8: #{addmm_cat.1} parent=1 // pred_region
      _
    $region9: #{addmm_cat.1} parent=1 // pred_fallthru
      _
    // Predicated region
    $region10: #{addmm_cat.1} parent=1 // pred_check
      _
    $region11: #{addmm_cat.1} parent=1 // pred_check_branch
      %14 = sbr.rel (0) target = $region13
    $region12: #{addmm_cat.1} parent=1 // pred_region
      _
    $region13: #{addmm_cat.1} parent=1 // pred_fallthru
      _
    %v15 = vld [vmem:[%s0] sm:$0xff]
    %v16 = vld [vmem:[%s0 + $0x8] sm:$0xff]
    %v17 = vld [vmem:[%s0 + $0x10] sm:$0xff]
    %v18 = vld [vmem:[%s0 + $0x18] sm:$0xff]
    %v19 = vld [vmem:[%s0 + $0x20] sm:$0xff]
    %v20 = vld [vmem:[%s0 + $0x28] sm:$0xff]
    %v21 = vld [vmem:[%s0 + $0x30] sm:$0xff]
    %v22 = vld [vmem:[%s0 + $0x38] sm:$0xff]
    %v23 = vld [vmem:[%s1] sm:$0xff]
    %v24 = vld [vmem:[%s1 + $0x8] sm:$0xff]
    %v25 = vld [vmem:[%s1 + $0x10] sm:$0xff]
    %v26 = vld [vmem:[%s1 + $0x18] sm:$0xff]
    %v27 = vld [vmem:[%s1 + $0x20] sm:$0xff]
    %v28 = vld [vmem:[%s1 + $0x28] sm:$0xff]
    %v29 = vld [vmem:[%s1 + $0x30] sm:$0xff]
    %v30 = vld [vmem:[%s1 + $0x38] sm:$0xff]
    %v31 = vld [vmem:[%s2] sm:$0xff]
    %v32 = vld [vmem:[%s2 + $0x8] sm:$0xff]
    %v33 = vld [vmem:[%s2 + $0x10] sm:$0xff]
    %v34 = vld [vmem:[%s2 + $0x18] sm:$0xff]
    %vm35 = vcmask 261120
    %v37 = vsel %vm35, %v23, 0
    %v40 = vsel %vm35, %v24, 0
    %v43 = vsel %vm35, %v25, 0
    %v46 = vsel %vm35, %v26, 0
    %v49 = vsel %vm35, %v27, 0
    %v52 = vsel %vm35, %v28, 0
    %v55 = vsel %vm35, %v29, 0
    %v58 = vsel %vm35, %v30, 0
    %60 = vmatpush.msra.mxu0 0.0
    %61 = vmatpush.msra.mxu0 0.0
    %62 = vmatpush.msra.mxu0 0.0
    %63 = vmatpush.msra.mxu0 0.0
    %64 = vmatpush.msra.mxu0 0.0
    %65 = vmatpush.msra.mxu0 0.0
    %66 = vmatpush.msra.mxu0 0.0
    %67 = vmatpush.msra.mxu0 0.0
    %68 = vmatpush.msra.mxu0 0.0
    %69 = vmatpush.msra.mxu0 0.0
    %70 = vmatpush.msra.mxu0 0.0
    %71 = vmatpush.msra.mxu0 0.0
    %72 = vmatpush.msra.mxu0 %v34
    %73 = vmatpush.msra.mxu0 %v33
    %74 = vmatpush.msra.mxu0 %v32
    %75 = vmatpush.msra.mxu0 %v31
    %76 = vmatmul.f32.gmra.mxu0 %v37
    %v77 = vpop.f32.mrf.mxu0
    %v78 = vadd.f32 0.0, %v77
    %79 = vmatmul.f32.gmra.mxu0 %v40
    %v80 = vpop.f32.mrf.mxu0
    %v81 = vadd.f32 0.0, %v80
    %82 = vmatmul.f32.gmra.mxu0 %v43
    %v83 = vpop.f32.mrf.mxu0
    %v84 = vadd.f32 0.0, %v83
    %85 = vmatmul.f32.gmra.mxu0 %v46
    %v86 = vpop.f32.mrf.mxu0
    %v87 = vadd.f32 0.0, %v86
    %88 = vmatmul.f32.gmra.mxu0 %v49
    %v89 = vpop.f32.mrf.mxu0
    %v90 = vadd.f32 0.0, %v89
    %91 = vmatmul.f32.gmra.mxu0 %v52
    %v92 = vpop.f32.mrf.mxu0
    %v93 = vadd.f32 0.0, %v92
    %94 = vmatmul.f32.gmra.mxu0 %v55
    %v95 = vpop.f32.mrf.mxu0
    %v96 = vadd.f32 0.0, %v95
    %97 = vmatmul.f32.gmra.mxu0 %v58
    %v98 = vpop.f32.mrf.mxu0
    %v99 = vadd.f32 0.0, %v98
    %100 = vdwg.mxu0
    %v101 = vadd.f32 %v15, %v78
    %v102 = vadd.f32 %v16, %v81
    %v103 = vadd.f32 %v17, %v84
    %v104 = vadd.f32 %v18, %v87
    %v105 = vadd.f32 %v19, %v90
    %v106 = vadd.f32 %v20, %v93
    %v107 = vadd.f32 %v21, %v96
    %v108 = vadd.f32 %v22, %v99
    %vm109 = vcmask 523264
    %110 = vst.msk [vmem:[#allocation2] sm:$0xff] %vm109, %v101
    %111 = vst.msk [vmem:[#allocation2 + $0x8] sm:$0xff] %vm109, %v102
    %112 = vst.msk [vmem:[#allocation2 + $0x10] sm:$0xff] %vm109, %v103
    %113 = vst.msk [vmem:[#allocation2 + $0x18] sm:$0xff] %vm109, %v104
    %114 = vst.msk [vmem:[#allocation2 + $0x20] sm:$0xff] %vm109, %v105
    %115 = vst.msk [vmem:[#allocation2 + $0x28] sm:$0xff] %vm109, %v106
    %116 = vst.msk [vmem:[#allocation2 + $0x30] sm:$0xff] %vm109, %v107
    %117 = vst.msk [vmem:[#allocation2 + $0x38] sm:$0xff] %vm109, %v108
    // Predicated region
    $region14: #{addmm_cat.1} parent=1 // pred_check
      _
    $region15: #{addmm_cat.1} parent=1 // pred_check_branch
      %119 = sbr.rel (0) target = $region17
    $region16: #{addmm_cat.1} parent=1 // pred_region
      %121 = vsyncadd [#allocation3], 0
      %s122 = sshll.u32 [#allocation2], 4
      %s123 = int_to_ptr.vmem [resolvable:$true] %s122
      %s124 = sshll.u32 %s3, 4
      %s125 = int_to_ptr.hbm [resolvable:$true] %s124
      %130 = dma.vmem_to_hbm [thread:$0]  %s123, 1024, %s125, [#allocation3], 128, 128, 8
    $region17: #{addmm_cat.1} parent=1 // pred_fallthru
      _
    // Predicated region
    $region18: #{addmm_cat.1} parent=1 // pred_check
      _
    $region19: #{addmm_cat.1} parent=1 // pred_check_branch
      %132 = sbr.rel (0) target = $region21
    $region20: #{addmm_cat.1} parent=1 // pred_region
      %134 = dma.done [#allocation3], 1024
    $region21: #{addmm_cat.1} parent=1 // pred_fallthru
      _
    %135 = vsyncpa [#allocation3], 1

</llo_original>
